<compile_context>
chip_gen: v7x
topology: tpu7x:2x2x1
jax: 0.10.0
libtpu: 0.0.40
codegen_flags: <defaults>
</compile_context>

<pallas_src>
import functools

import jax
import jax.numpy as jnp
from jax.experimental import pallas as pl
from jax.experimental.pallas import tpu as pltpu

_LANES = 128
_SUBLANES = 8
_LN2 = 0.6931471805599453
_NEG_BIG = -1e30  # sigmoid(-1e30) == 0 -> padded logits contribute nothing


def _log_cosh_one_minus(dice):
    # Stable log(cosh(z)) with z = 1 - dice, using only exp/log/abs:
    #   log(cosh(z)) = |z| - log(2) + log(1 + exp(-2|z|))
    z = 1.0 - dice
    az = jnp.abs(z)
    return az - _LN2 + jnp.log(1.0 + jnp.exp(-2.0 * az))


def _lc_dice_single_kernel(xt_ref, out_ref, *, smooth):
    # Whole packed slab resident in VMEM; single invocation, no pipeline.
    x = jax.nn.sigmoid(xt_ref[0])          # (rows, 128) logits -> probs
    t = xt_ref[1]                           # (rows, 128) targets
    inter = jnp.sum(x * t).reshape(1, 1)
    denom = jnp.sum(x + t).reshape(1, 1)    # fused sum(x) + sum(t)
    dice = (2.0 * inter + smooth) / (denom + smooth)
    out_ref[...] = _log_cosh_one_minus(dice)


def _lc_dice_tiled_kernel(xt_ref, out_ref, inter_ref, denom_ref, *, smooth):
    i = pl.program_id(0)

    @pl.when(i == 0)
    def _init():
        inter_ref[...] = jnp.zeros_like(inter_ref)
        denom_ref[...] = jnp.zeros_like(denom_ref)

    x = jax.nn.sigmoid(xt_ref[0])
    t = xt_ref[1]
    inter_ref[...] += jnp.sum(x * t).reshape(1, 1)
    denom_ref[...] += jnp.sum(x + t).reshape(1, 1)

    @pl.when(i == pl.num_programs(0) - 1)
    def _finalize():
        dice = (2.0 * inter_ref[...] + smooth) / (denom_ref[...] + smooth)
        out_ref[...] = _log_cosh_one_minus(dice)


def lc_dice_loss(inputs, targets, smooth=1.0, tile_rows=1024):
    """log(cosh(1 - dice)) over flattened inputs (logits) and targets."""
    assert tile_rows % _SUBLANES == 0

    x = inputs.reshape(-1)
    t = targets.reshape(-1)
    if x.dtype != jnp.float32:
        x = x.astype(jnp.float32)
    if t.dtype != jnp.float32:
        t = t.astype(jnp.float32)

    n = x.shape[0]
    rows = pl.cdiv(n, _LANES)
    single_block = rows <= tile_rows
    if not single_block:
        rows = pl.cdiv(rows, tile_rows) * tile_rows

    n_pad = rows * _LANES
    pad = n_pad - n
    if pad:
        # No-op for the module's default 2*4*16*16 = 2048-element shape.
        # Padding contributes 0 to both sums: sigmoid(-1e30) == 0, target == 0.
        x = jnp.pad(x, (0, pad), constant_values=_NEG_BIG)
        t = jnp.pad(t, (0, pad), constant_values=0.0)

    # Pack both operands into one slab -> a single kernel input / DMA.
    xt = jnp.stack([x.reshape(rows, _LANES), t.reshape(rows, _LANES)])

    smooth = float(smooth)

    if single_block:
        out = pl.pallas_call(
            functools.partial(_lc_dice_single_kernel, smooth=smooth),
            out_shape=jax.ShapeDtypeStruct((1, 1), jnp.float32),
            in_specs=[pl.BlockSpec(memory_space=pltpu.MemorySpace.VMEM)],
            out_specs=pl.BlockSpec(memory_space=pltpu.MemorySpace.VMEM),
        )(xt)
    else:
        # Row-tiled reduction with (1, 1) VMEM accumulators.  ~1 MiB packed
        # tile per step (2 MiB double-buffered) is safe on v5e/v6e/v7x.
        # TODO(synk): for v7x at very large N, split the row axis across the
        # two TensorCores (per-core partials + trailing 2-element XLA reduce).
        grid = (rows // tile_rows,)
        out = pl.pallas_call(
            functools.partial(_lc_dice_tiled_kernel, smooth=smooth),
            out_shape=jax.ShapeDtypeStruct((1, 1), jnp.float32),
            grid=grid,
            in_specs=[
                pl.BlockSpec((2, tile_rows, _LANES), lambda i: (0, i, 0)),
            ],
            out_specs=pl.BlockSpec((1, 1), lambda i: (0, 0)),
            scratch_shapes=[
                pltpu.VMEM((1, 1), jnp.float32),
                pltpu.VMEM((1, 1), jnp.float32),
            ],
            compiler_params=pltpu.CompilerParams(
                dimension_semantics=("arbitrary",)
            ),
        )(xt)
    return out[0, 0]


def _reference(inputs, targets, smooth=1.0):
    x = jax.nn.sigmoid(inputs.astype(jnp.float32)).reshape(-1)
    t = targets.astype(jnp.float32).reshape(-1)
    inter = jnp.sum(x * t)
    dice = (2.0 * inter + smooth) / (jnp.sum(x) + jnp.sum(t) + smooth)
    return jnp.log(jnp.cosh(1.0 - dice))


if __name__ == "__main__":
    key = jax.random.PRNGKey(0)
    k1, k2 = jax.random.split(key)
    # NCHW logits and binary targets, as the PyTorch module expects.
    inputs = jax.random.normal(k1, (2, 4, 16, 16), jnp.float32)
    targets = jax.random.bernoulli(k2, 0.3, (2, 4, 16, 16)).astype(jnp.float32)

    ref = _reference(inputs, targets, smooth=1.0)

    # Default (single-block, no-grid) path.
    loss = jax.block_until_ready(lc_dice_loss(inputs, targets, smooth=1.0))
    assert jnp.allclose(loss, ref, atol=1e-5, rtol=1e-5), (loss, ref)

    # Exercise the row-tiled accumulator path (used for large tensors) by
    # forcing a tiny tile: 16 rows -> grid of 2 steps.
    loss_tiled = jax.block_until_ready(
        lc_dice_loss(inputs, targets, smooth=1.0, tile_rows=8))
    assert jnp.allclose(loss_tiled, ref, atol=1e-5, rtol=1e-5), (loss_tiled, ref)

    print("KERNEL_OK")
</pallas_src>

<mosaic_0001>
module attributes {stable_mosaic.version = 11 : i64} {
  func.func @_lc_dice_single_kernel(%arg0: memref<2x16x128xf32, #tpu.memory_space<vmem>>, %arg1: memref<1x1xf32, #tpu.memory_space<vmem>>) attributes {dimension_semantics = [], scalar_prefetch = 0 : i64, scratch_operands = 0 : i64, tpu.core_type = #tpu.core_type<tc>} {
    %c0 = arith.constant 0 : index
    %c0_0 = arith.constant 0 : index
    %c0_1 = arith.constant 0 : index
    %0 = vector.load %arg0[%c0, %c0_0, %c0_1] : memref<2x16x128xf32, #tpu.memory_space<vmem>>, vector<1x16x128xf32>
    %1 = vector.shape_cast %0 : vector<1x16x128xf32> to vector<16x128xf32>
    %2 = arith.negf %1 : vector<16x128xf32>
    %3 = math.exp %2 : vector<16x128xf32>
    %cst = arith.constant 1.000000e+00 : f32
    %4 = vector.broadcast %cst : f32 to vector<16x128xf32>
    %5 = arith.addf %4, %3 : vector<16x128xf32>
    %6 = arith.divf %4, %5 : vector<16x128xf32>
    %c1 = arith.constant 1 : index
    %c0_2 = arith.constant 0 : index
    %c0_3 = arith.constant 0 : index
    %7 = vector.load %arg0[%c1, %c0_2, %c0_3] : memref<2x16x128xf32, #tpu.memory_space<vmem>>, vector<1x16x128xf32>
    %8 = vector.shape_cast %7 : vector<1x16x128xf32> to vector<16x128xf32>
    %9 = arith.mulf %6, %8 : vector<16x128xf32>
    %10 = vector.shape_cast %9 : vector<16x128xf32> to vector<1x16x128xf32>
    %cst_4 = arith.constant dense<0.000000e+00> : vector<1xf32>
    %11 = vector.multi_reduction <add>, %10, %cst_4 [1, 2] : vector<1x16x128xf32> to vector<1xf32>
    %12 = vector.shape_cast %11 : vector<1xf32> to vector<1x1x1xf32>
    %13 = vector.extract %12[0, 0, 0] : f32 from vector<1x1x1xf32>
    %14 = vector.broadcast %13 : f32 to vector<1x1xf32>
    %15 = arith.addf %6, %8 : vector<16x128xf32>
    %16 = vector.shape_cast %15 : vector<16x128xf32> to vector<1x16x128xf32>
    %cst_5 = arith.constant dense<0.000000e+00> : vector<1xf32>
    %17 = vector.multi_reduction <add>, %16, %cst_5 [1, 2] : vector<1x16x128xf32> to vector<1xf32>
    %18 = vector.shape_cast %17 : vector<1xf32> to vector<1x1x1xf32>
    %19 = vector.extract %18[0, 0, 0] : f32 from vector<1x1x1xf32>
    %20 = vector.broadcast %19 : f32 to vector<1x1xf32>
    %cst_6 = arith.constant 2.000000e+00 : f32
    %21 = vector.broadcast %cst_6 : f32 to vector<1x1xf32>
    %22 = arith.mulf %21, %14 : vector<1x1xf32>
    %cst_7 = arith.constant 1.000000e+00 : f32
    %23 = vector.broadcast %cst_7 : f32 to vector<1x1xf32>
    %24 = arith.addf %22, %23 : vector<1x1xf32>
    %cst_8 = arith.constant 1.000000e+00 : f32
    %25 = vector.broadcast %cst_8 : f32 to vector<1x1xf32>
    %26 = arith.addf %20, %25 : vector<1x1xf32>
    %27 = arith.divf %24, %26 : vector<1x1xf32>
    %cst_9 = arith.constant 1.000000e+00 : f32
    %28 = vector.broadcast %cst_9 : f32 to vector<1x1xf32>
    %29 = arith.subf %28, %27 : vector<1x1xf32>
    %30 = math.absf %29 : vector<1x1xf32>
    %cst_10 = arith.constant 0.693147182 : f32
    %31 = vector.broadcast %cst_10 : f32 to vector<1x1xf32>
    %32 = arith.subf %30, %31 : vector<1x1xf32>
    %cst_11 = arith.constant -2.000000e+00 : f32
    %33 = vector.broadcast %cst_11 : f32 to vector<1x1xf32>
    %34 = arith.mulf %33, %30 : vector<1x1xf32>
    %35 = math.exp %34 : vector<1x1xf32>
    %cst_12 = arith.constant 1.000000e+00 : f32
    %36 = vector.broadcast %cst_12 : f32 to vector<1x1xf32>
    %37 = arith.addf %36, %35 : vector<1x1xf32>
    %38 = math.log %37 : vector<1x1xf32>
    %39 = arith.addf %32, %38 : vector<1x1xf32>
    %c0_13 = arith.constant 0 : index
    %c0_14 = arith.constant 0 : index
    %40 = vector.load %arg1[%c0_13, %c0_14] : memref<1x1xf32, #tpu.memory_space<vmem>>, vector<1x1xf32>
    tpu.vector_store %arg1[%c0_13, %c0_14], %39 {strides = array<i32>} : memref<1x1xf32, #tpu.memory_space<vmem>>, vector<1x1xf32>,
    return
  }
}

</mosaic_0001>

<llo_original>
// kernel: tpu_custom_call.1
$region0: #{tpu_custom_call.1}
  #allocation0 [shape = 'u32[]', space=smem, size = 0x4, offset = 0x4, fixed_abs, tag = 'smem constant byte address 0x4 - core index']
  #allocation1 [shape = 'u32[144,128]{1,0:T(1,128)}', space=vmem, size = 0x12000, scoped, tag = 'internal scratch']
  %s0 = inlined_call_operand.hbm [shape: f32[2,16,128], index: 0, kind: input, shape index: {}]
  %s1 = inlined_call_operand.hbm [shape: f32[1,1], index: 1, kind: output, shape index: {}]
  %s2 = sld [smem:[#allocation0]]
  $region18: #{tpu_custom_call.1} parent=0
    _
  %s4 = ssub.s32 1, %s2
  %s5 = scalar_select 0, %s4, %s2
  $region1: #{tpu_custom_call.1} parent=0
    #allocation2 [shape = 'u8[16384]{0}', space=vmem, size = 0x4000, scoped, tag = 'input window, operand 0, single buffered']
    #allocation3 [shape = 's32[1]{0}', space=sflag, size = 0x4, scoped, tag = 'scoped memory for tpu_custom_call.1']
    #allocation4 [shape = 's32[1]{0}', space=sflag, size = 0x4, scoped, tag = 'scoped memory for tpu_custom_call.1']
    #allocation5 [shape = 'u8[512]{0}', space=vmem, size = 0x400, scoped, tag = 'output window, operand 0, single buffered']
    %6 = vsyncpa [#allocation3], 0
    %7 = vsyncpa [#allocation4], 0
    // Predicated region
    $region2: #{tpu_custom_call.1} parent=1 // pred_check
      _
    $region3: #{tpu_custom_call.1} parent=1 // pred_check_branch
      %9 = sbr.rel (0) target = $region5
    $region4: #{tpu_custom_call.1} parent=1 // pred_region
      %s11 = ssub.s32 512, 512
      %12 = vsyncadd [#allocation3], %s11
      %s13 = sshll.u32 [#allocation2], 4
      %s14 = int_to_ptr.vmem [resolvable:$true] %s13
      %19 = dma.hbm_to_vmem [thread:$0]  %s0, 512, %s14, [#allocation3], 128, 128, 8
    $region5: #{tpu_custom_call.1} parent=1 // pred_fallthru
      _
    // Predicated region
    $region6: #{tpu_custom_call.1} parent=1 // pred_check
      _
    $region7: #{tpu_custom_call.1} parent=1 // pred_check_branch
      %21 = sbr.rel (0) target = $region9
    $region8: #{tpu_custom_call.1} parent=1 // pred_region
      %22 = dma.done [#allocation3], 512
    $region9: #{tpu_custom_call.1} parent=1 // pred_fallthru
      _
    %v23 = vld [vmem:[#allocation2] sm:$0xff]
    %v24 = vld [vmem:[#allocation2 + $0x8] sm:$0xff]
    %v25 = vxor.u32 %v23, 2147483648
    %v26 = vxor.u32 %v24, 2147483648
    %v27 = vmul.f32 %v25, 1.442695
    %v28 = vpow.pop %v27
    %v29 = vmul.f32 %v26, 1.442695
    %v30 = vpow.pop %v29
    %v31 = vadd.f32 %v28, 1.0
    %v32 = vadd.f32 %v30, 1.0
    %v33 = vrcp.pop %v31
    %v34 = vmul.f32 1.0, %v33
    %v35 = vrcp.pop %v32
    %v36 = vmul.f32 1.0, %v35
    %s37 = scalar_lea.vmem [#allocation2], 16
    %v38 = vld [vmem:[%s37] sm:$0xff]
    %v39 = vld [vmem:[%s37 + $0x8] sm:$0xff]
    %v40 = vmul.f32 %v34, %v38
    %v41 = vmul.f32 %v36, %v39
    %v42 = vadd.f32 %v40, %v41
    %43 = vadd.xlane.f32.xlu0 %v42
    %v44 = vpop.xlane.xlu0 %43
    %v45 = vrot.slane %v44, 4
    %v46 = vadd.f32 %v44, %v45
    %v47 = vrot.slane %v46, 2
    %v48 = vadd.f32 %v46, %v47
    %v49 = vrot.slane %v48, 1
    %v50 = vadd.f32 %v48, %v49
    %s51 = vtos %v50
    %v52 = vstv %s51
    %v53 = vadd.f32 %v34, %v38
    %v54 = vadd.f32 %v36, %v39
    %v55 = vadd.f32 %v53, %v54
    %56 = vadd.xlane.f32.xlu0 %v55
    %v57 = vpop.xlane.xlu0 %56
    %v58 = vrot.slane %v57, 4
    %v59 = vadd.f32 %v57, %v58
    %v60 = vrot.slane %v59, 2
    %v61 = vadd.f32 %v59, %v60
    %v62 = vrot.slane %v61, 1
    %v63 = vadd.f32 %v61, %v62
    %s64 = vtos %v63
    %v65 = vstv %s64
    %v66 = vmul.f32 %v52, 2.0
    %v67 = vadd.f32 %v66, 1.0
    %v68 = vadd.f32 %v65, 1.0
    %v69 = vrcp.pop %v68
    %v70 = vmul.f32 %v67, %v69
    %v71 = vsub.f32 1.0, %v70
    %v72 = vand.u32 2147483647, %v71
    %v73 = vsub.f32 %v72, 0.6931472
    %v74 = vmul.f32 %v72, -2.0
    %v75 = vmul.f32 %v74, 1.442695
    %v76 = vpow.pop %v75
    %v77 = vadd.f32 %v76, 1.0
    %v78 = vlog2.pop %v77
    %v79 = vmul.f32 %v78, 0.6931472
    %v80 = vadd.f32 %v73, %v79
    %vm81 = vcmask 0
    %82 = vst.msk [vmem:[#allocation5] sm:$0x1] %vm81, %v80
    // Predicated region
    $region10: #{tpu_custom_call.1} parent=1 // pred_check
      _
    $region11: #{tpu_custom_call.1} parent=1 // pred_check_branch
      %84 = sbr.rel (0) target = $region13
    $region12: #{tpu_custom_call.1} parent=1 // pred_region
      %s86 = ssub.s32 16, 16
      %87 = vsyncadd [#allocation4], %s86
      %s89 = sshll.u32 [#allocation5], 4
      %s90 = int_to_ptr.vmem [resolvable:$true] %s89
      %92 = dma.vmem_to_hbm [thread:$0]  %s90, 16, %s1, [#allocation4]
    $region13: #{tpu_custom_call.1} parent=1 // pred_fallthru
      _
    // Predicated region
    $region14: #{tpu_custom_call.1} parent=1 // pred_check
      _
    $region15: #{tpu_custom_call.1} parent=1 // pred_check_branch
      %94 = sbr.rel (0) target = $region17
    $region16: #{tpu_custom_call.1} parent=1 // pred_region
      %95 = dma.done [#allocation4], 16
    $region17: #{tpu_custom_call.1} parent=1 // pred_fallthru
      _
    %96 = vsyncpa [#allocation3], 1
    %97 = vsyncpa [#allocation4], 1

</llo_original>
